<compile_context>
chip_gen: v7x
topology: tpu7x:2x2x1
jax: 0.10.0
libtpu: 0.0.40
codegen_flags: <defaults>
</compile_context>

<pallas_src>
import math
from functools import partial

import jax
import jax.numpy as jnp
from jax.experimental import pallas as pl
from jax.experimental.pallas import tpu as pltpu


_LANES = 1024          # lane width: multiple of 128 -> unmasked stores
_ROWS_PER_TILE = 512   # 512 x 1024 f32 tile = 2 MiB; ~8 MiB VMEM double-buffered


# ------------------------------ Pallas kernel ------------------------------ #

def _grad_reverse_kernel(neg_coeff_ref, g_ref, o_ref):
    # grad_in = (-coeff) * grad_out ; negation already folded into the scalar.
    scale = neg_coeff_ref[0].astype(o_ref.dtype)
    o_ref[...] = g_ref[...] * scale


def _run_grad_reverse(g, coeff):
    """Apply grad_in = -coeff * grad_out with a tiled, lane-dense Pallas kernel."""
    orig_shape = g.shape
    total = math.prod(orig_shape) if orig_shape else 1

    # Flatten to a lane-dense 2-D slab (rows, _LANES); pad the tail if needed.
    flat = g.reshape((total,))
    rows = pl.cdiv(total, _LANES)
    padded_total = rows * _LANES
    if padded_total != total:
        flat = jnp.pad(flat, (0, padded_total - total))
    g2d = flat.reshape((rows, _LANES))

    # Row tile: full array when small (always a legal block), else 512 (mult. of 8).
    tm = rows if rows <= _ROWS_PER_TILE else _ROWS_PER_TILE
    grid = (pl.cdiv(rows, tm),)

    neg_coeff = jnp.asarray([-float(coeff)], dtype=jnp.float32)

    out2d = pl.pallas_call(
        _grad_reverse_kernel,
        out_shape=jax.ShapeDtypeStruct((rows, _LANES), g.dtype),
        grid=grid,
        in_specs=[
            pl.BlockSpec(memory_space=pltpu.MemorySpace.SMEM),   # scalar -coeff
            pl.BlockSpec((tm, _LANES), lambda i: (i, 0)),
        ],
        out_specs=pl.BlockSpec((tm, _LANES), lambda i: (i, 0)),
        compiler_params=pltpu.CompilerParams(
            dimension_semantics=("parallel",)),                   # dual-TC on v7x
    )(neg_coeff, g2d)

    out_flat = out2d.reshape((padded_total,))
    if padded_total != total:
        out_flat = out_flat[:total]
    return out_flat.reshape(orig_shape)


# --------------------- custom_vjp gradient-reverse op ---------------------- #

@partial(jax.custom_vjp, nondiff_argnums=(1,))
def gradient_reverse(x, coeff):
    # Forward is identity (== x * 1.0): no kernel, no extra HBM traffic.
    return x


def _grl_fwd(x, coeff):
    return x, None


def _grl_bwd(coeff, _res, g):
    return (_run_grad_reverse(g, coeff),)


gradient_reverse.defvjp(_grl_fwd, _grl_bwd)


# ---------------------------- module wrapper ------------------------------- #

class GradientReverseLayer:
    """JAX/Pallas port of the PyTorch GradientReverseLayer."""

    def __call__(self, input, coeff=1.0):
        return gradient_reverse(input, float(coeff))


# --------------------------------- main ------------------------------------ #

if __name__ == "__main__":
    key = jax.random.PRNGKey(0)
    x = jax.random.normal(key, (2, 4, 16, 16), dtype=jnp.float32)  # NCHW

    layer = GradientReverseLayer()

    # forward: identity
    y = layer(x)
    jax.block_until_ready(y)
    assert y.shape == x.shape and y.dtype == x.dtype
    assert jnp.allclose(y, x), "forward must be identity"

    # backward: gradient reversal scaled by coeff (runs the Pallas kernel)
    coeff = 0.75

    def loss_fn(inp):
        return jnp.sum(layer(inp, coeff) * 3.0)

    gx = jax.grad(loss_fn)(x)
    jax.block_until_ready(gx)
    expected = jnp.full_like(x, -coeff * 3.0)
    assert jnp.allclose(gx, expected, atol=1e-6), "backward must be -coeff * grad"

    # non-lane-aligned shape exercises the pad/slice path of the backward kernel
    x_odd = jax.random.normal(jax.random.PRNGKey(1), (3, 5, 7), dtype=jnp.float32)
    gx_odd = jax.grad(lambda inp: jnp.sum(layer(inp, 2.0)))(x_odd)
    jax.block_until_ready(gx_odd)
    assert gx_odd.shape == x_odd.shape
    assert jnp.allclose(gx_odd, jnp.full_like(x_odd, -2.0), atol=1e-6)

    # also invoke the backward Pallas kernel directly once and block on it
    gdirect = _run_grad_reverse(jnp.ones_like(x), 1.0)
    jax.block_until_ready(gdirect)
    assert jnp.allclose(gdirect, -jnp.ones_like(x))

    print("KERNEL_OK")
</pallas_src>

<mosaic_0001>
module attributes {stable_mosaic.version = 11 : i64} {
  func.func @_grad_reverse_kernel(%arg0: i32, %arg1: memref<1xf32, #tpu.memory_space<smem>>, %arg2: memref<2x1024xf32, #tpu.memory_space<vmem>>, %arg3: memref<2x1024xf32, #tpu.memory_space<vmem>>) attributes {dimension_semantics = [#tpu.dimension_semantics<parallel>], iteration_bounds = array<i64: 1>, scalar_prefetch = 0 : i64, scratch_operands = 0 : i64, tpu.core_type = #tpu.core_type<tc>, window_params = [{transform_indices = @transform_0, window_bounds = array<i64: 1>}, {transform_indices = @transform_1, window_bounds = array<i64: 2, 1024>}, {transform_indices = @transform_2, window_bounds = array<i64: 2, 1024>}]} {
    %c0 = arith.constant 0 : index
    %0 = memref.load %arg1[%c0] : memref<1xf32, #tpu.memory_space<smem>>
    %c0_0 = arith.constant 0 : index
    %c0_1 = arith.constant 0 : index
    %1 = vector.load %arg2[%c0_0, %c0_1] : memref<2x1024xf32, #tpu.memory_space<vmem>>, vector<2x1024xf32>
    %2 = vector.broadcast %0 : f32 to vector<2x1024xf32>
    %3 = arith.mulf %1, %2 : vector<2x1024xf32>
    %c0_2 = arith.constant 0 : index
    %c0_3 = arith.constant 0 : index
    %4 = vector.load %arg3[%c0_2, %c0_3] : memref<2x1024xf32, #tpu.memory_space<vmem>>, vector<2x1024xf32>
    tpu.vector_store %arg3[%c0_2, %c0_3], %3 {strides = array<i32>} : memref<2x1024xf32, #tpu.memory_space<vmem>>, vector<2x1024xf32>,
    return
  }
  func.func @transform_0(%arg0: i32) -> i32 {
    %c0_i32 = arith.constant 0 : i32
    %c0_i32_0 = arith.constant 0 : i32
    return %c0_i32 : i32
  }
  func.func @transform_1(%arg0: i32) -> (i32, i32) {
    %c0_i32 = arith.constant 0 : i32
    %c0_i32_0 = arith.constant 0 : i32
    return %arg0, %c0_i32 : i32, i32
  }
  func.func @transform_2(%arg0: i32) -> (i32, i32) {
    %c0_i32 = arith.constant 0 : i32
    %c0_i32_0 = arith.constant 0 : i32
    return %arg0, %c0_i32 : i32, i32
  }
}

</mosaic_0001>

<llo_original>
// kernel: tpu_custom_call.1
$region0: #{tpu_custom_call.1}
  #allocation0 [shape = 'u32[]', space=smem, size = 0x4, offset = 0x4, fixed_abs, tag = 'smem constant byte address 0x4 - core index']
  #allocation1 [shape = 'u32[144,128]{1,0:T(1,128)}', space=vmem, size = 0x12000, scoped, tag = 'internal scratch']
  #allocation2 [shape = 'f32[1]{0:T(128)S(6)}', space=smem, size = 0x200, scoped, tag = 'scoped memory for tpu_custom_call.1']
  %s0 = inlined_call_operand.<no memory space> [shape: f32[1], index: 0, kind: input, shape index: {}]
  %s1 = inlined_call_operand.hbm [shape: f32[2,1024], index: 1, kind: input, shape index: {}]
  %s2 = inlined_call_operand.hbm [shape: f32[2,1024], index: 2, kind: output, shape index: {}]
  %s3 = sld [smem:[#allocation0]]
  $region22: #{tpu_custom_call.1} parent=0
    _
  %s5 = ssub.s32 1, %s3
  %s6 = scalar_select 0, %s5, %s3
  %7 = sst [smem:[#allocation2]] %s0
  $region1: #{tpu_custom_call.1} parent=0
    #allocation3 [shape = 'u8[8192]{0}', space=vmem, size = 0x2000, scoped, tag = 'input window, operand 1, single buffered']
    #allocation4 [shape = 's32[1]{0}', space=sflag, size = 0x4, scoped, tag = 'scoped memory for tpu_custom_call.1']
    #allocation5 [shape = 's32[1]{0}', space=sflag, size = 0x4, scoped, tag = 'scoped memory for tpu_custom_call.1']
    #allocation6 [shape = 'u8[8192]{0}', space=vmem, size = 0x2000, scoped, tag = 'output window, operand 0, single buffered']
    %8 = vsyncpa [#allocation4], 0
    %9 = vsyncpa [#allocation5], 0
    // Predicated region
    $region2: #{tpu_custom_call.1} parent=1 // pred_check
      _
    $region3: #{tpu_custom_call.1} parent=1 // pred_check_branch
      %11 = sbr.rel (0) target = $region5
    $region4: #{tpu_custom_call.1} parent=1 // pred_region
      _
    $region5: #{tpu_custom_call.1} parent=1 // pred_fallthru
      _
    // Predicated region
    $region6: #{tpu_custom_call.1} parent=1 // pred_check
      _
    $region7: #{tpu_custom_call.1} parent=1 // pred_check_branch
      %13 = sbr.rel (0) target = $region9
    $region8: #{tpu_custom_call.1} parent=1 // pred_region
      %s15 = ssub.s32 256, 256
      %16 = vsyncadd [#allocation4], %s15
      %s18 = sshll.u32 [#allocation3], 4
      %s19 = int_to_ptr.vmem [resolvable:$true] %s18
      %21 = dma.hbm_to_vmem [thread:$0]  %s1, 256, %s19, [#allocation4]
    $region9: #{tpu_custom_call.1} parent=1 // pred_fallthru
      _
    // Predicated region
    $region10: #{tpu_custom_call.1} parent=1 // pred_check
      _
    $region11: #{tpu_custom_call.1} parent=1 // pred_check_branch
      %23 = sbr.rel (0) target = $region13
    $region12: #{tpu_custom_call.1} parent=1 // pred_region
      %24 = dma.done [#allocation4], 256
    $region13: #{tpu_custom_call.1} parent=1 // pred_fallthru
      _
    %s25 = sld [smem:[#allocation2]]
    %v26 = vld [vmem:[#allocation3] sm:$0xff]
    %v27 = vld [vmem:[#allocation3 + $0x8] sm:$0xff]
    %v28 = vstv %s25
    %v29 = vmul.f32 %v26, %v28
    %v30 = vmul.f32 %v27, %v28
    %31 = vst [vmem:[#allocation6] sm:$0xff] %v29
    %32 = vst [vmem:[#allocation6 + $0x8] sm:$0xff] %v30
    // Predicated region
    $region14: #{tpu_custom_call.1} parent=1 // pred_check
      _
    $region15: #{tpu_custom_call.1} parent=1 // pred_check_branch
      %34 = sbr.rel (0) target = $region17
    $region16: #{tpu_custom_call.1} parent=1 // pred_region
      %s36 = ssub.s32 256, 256
      %37 = vsyncadd [#allocation5], %s36
      %s39 = sshll.u32 [#allocation6], 4
      %s40 = int_to_ptr.vmem [resolvable:$true] %s39
      %42 = dma.vmem_to_hbm [thread:$0]  %s40, 256, %s2, [#allocation5]
    $region17: #{tpu_custom_call.1} parent=1 // pred_fallthru
      _
    // Predicated region
    $region18: #{tpu_custom_call.1} parent=1 // pred_check
      _
    $region19: #{tpu_custom_call.1} parent=1 // pred_check_branch
      %44 = sbr.rel (0) target = $region21
    $region20: #{tpu_custom_call.1} parent=1 // pred_region
      %45 = dma.done [#allocation5], 256
    $region21: #{tpu_custom_call.1} parent=1 // pred_fallthru
      _
    %46 = vsyncpa [#allocation4], 1
    %47 = vsyncpa [#allocation5], 1

</llo_original>
